<compile_context>
chip_gen: v7x
topology: tpu7x:2x2x1
jax: 0.10.0
libtpu: 0.0.40
codegen_flags: <defaults>
</compile_context>

<pallas_src>
import functools

import jax
import jax.numpy as jnp
import numpy as np
from jax import lax
from jax.experimental import pallas as pl
from jax.experimental.pallas import tpu as pltpu


def _round_up(x, m):
    return ((x + m - 1) // m) * m


def pool_embed_kernel(x_ref, w_ref, b_ref, o_ref, *, kk):
    # x_ref: (KK, TB, F) bf16 window-major patches
    # w_ref: (F, D) bf16, Linear weight^T already scaled by 1/KK (pool average)
    # b_ref: (1, D) f32 bias
    # o_ref: (TB, D)
    # Pooling reduction: KK-1 dense (TB, F) adds (pure VALU, full tiles).
    pooled = x_ref[0]
    for j in range(1, kk):
        pooled = pooled + x_ref[j]
    # Linear on the MXU: bf16 x bf16 -> f32 accumulate.  The 1/KK average is
    # already folded into w_ref, bias is added in f32.
    y = jnp.dot(pooled, w_ref[...], preferred_element_type=jnp.float32)
    y = y + b_ref[...]
    # Normalize(power=2): x / sqrt(sum(x^2, dim=1)).  rsqrt goes to the (idle)
    # EUP slot.  No eps, matching the reference Normalize module exactly.
    ss = jnp.sum(y * y, axis=1, keepdims=True)                # (TB, 1)
    o_ref[...] = (y * lax.rsqrt(ss)).astype(o_ref.dtype)


def pool_embed(x, w_t, bias, *, pool_size, block_b=256):
    """x: (B, C, H, W) NCHW; w_t: (F, D) = Linear weight transposed; bias: (D,)."""
    B, C, H, W = x.shape
    P = pool_size
    # TODO(synk): AdaptiveAvgPool2d with non-divisible H/W uses uneven windows;
    # only the evenly-divisible case (as in this config) is implemented.
    assert H % P == 0 and W % P == 0
    kh, kw = H // P, W // P
    KK = kh * kw
    F = C * P * P
    D = w_t.shape[1]

    # Window-major patch tensor xp[j, b, f]: j = i*kw + jw (position inside the
    # kh x kw pooling window), f = c*P*P + ph*P + pw (PyTorch Flatten order of
    # the pooled C x P x P map).  NOTE: this is a real XLA transpose, i.e. one
    # extra HBM pass over x outside the kernel; the alternative (folding
    # pool+flatten into a KK-x larger weight so the kernel reads x.reshape(B,-1)
    # directly) trades that pass for KK-x weight bytes / MXU FLOPs.
    xp = x.reshape(B, C, P, kh, P, kw).transpose(3, 5, 0, 1, 2, 4)
    xp = xp.reshape(KK, B, F).astype(jnp.bfloat16)

    # Fold the 1/KK pooling average into the weight (one-time constant fold)
    # and cast to bf16 for the MXU; bias stays f32.
    w_s = (w_t * (1.0 / KK)).astype(jnp.bfloat16)
    bias2d = bias.reshape(1, D).astype(jnp.float32)

    # Batch tile: multiple of 8 sublanes.  block_b=256 matches the v6e/v7x MXU
    # M tile (use 128 on v5e).  When B allows, keep >= 2 grid steps so both
    # v7x TensorCores get work.
    tb = max(8, min(block_b, _round_up(B, 8)))
    if B > 8 and pl.cdiv(B, tb) < 2:
        tb = max(8, _round_up(pl.cdiv(B, 2), 8))
    Bp = _round_up(B, tb)
    if Bp != B:
        xp = jnp.pad(xp, ((0, 0), (0, Bp - B), (0, 0)))
    nb = Bp // tb

    # VMEM budget at tb=256: 2 x (KK*256*F bf16) = 4 MiB x-buffers + 256 KiB
    # weight + 2 x 128 KiB output -- well under the 16/32 MiB scoped-VMEM
    # default on v5e/v6e/v7x, so no vmem_limit_bytes override is needed.
    kernel = functools.partial(pool_embed_kernel, kk=KK)
    out = pl.pallas_call(
        kernel,
        out_shape=jax.ShapeDtypeStruct((Bp, D), x.dtype),
        grid=(nb,),
        in_specs=[
            pl.BlockSpec((KK, tb, F), lambda b: (0, b, 0)),  # window-major patches
            pl.BlockSpec((F, D), lambda b: (0, 0)),          # scaled weight^T (resident)
            pl.BlockSpec((1, D), lambda b: (0, 0)),          # bias (resident)
        ],
        out_specs=pl.BlockSpec((tb, D), lambda b: (b, 0)),
        compiler_params=pltpu.CompilerParams(
            dimension_semantics=("parallel",)),
    )(xp, w_s, bias2d)
    return out[:B]


def pool_embed_ref(x, w_t, bias, *, pool_size):
    """Pure-JAX f32 reference matching the PyTorch module."""
    B, C, H, W = x.shape
    P = pool_size
    kh, kw = H // P, W // P
    pooled = x.reshape(B, C, P, kh, P, kw).mean(axis=(3, 5))  # AdaptiveAvgPool2d
    flat = pooled.reshape(B, -1)                              # Flatten
    y = flat @ w_t + bias                                     # Linear
    norm = jnp.sqrt(jnp.sum(y * y, axis=1, keepdims=True))    # Normalize(2)
    return y / norm


if __name__ == "__main__":
    # layer=0 config from PoolEmbed.__init__
    pool_size, n_channels, dim_out = 8, 16, 128
    B, H, W = 2, 16, 16
    F = n_channels * pool_size * pool_size

    key = jax.random.PRNGKey(0)
    kx, kw_, kb = jax.random.split(key, 3)
    x = jax.random.normal(kx, (B, n_channels, H, W), dtype=jnp.float32)
    # Deterministic Linear params (PyTorch-style uniform(-1/sqrt(F), 1/sqrt(F))).
    bound = 1.0 / float(np.sqrt(F))
    w = jax.random.uniform(kw_, (dim_out, F), minval=-bound, maxval=bound,
                           dtype=jnp.float32)
    bias = jax.random.uniform(kb, (dim_out,), minval=-bound, maxval=bound,
                              dtype=jnp.float32)

    out = pool_embed(x, w.T, bias, pool_size=pool_size)
    out = jax.block_until_ready(out)

    ref = pool_embed_ref(x, w.T, bias, pool_size=pool_size)
    assert out.shape == (B, dim_out)
    # bf16 matmul inputs -> loose tolerance vs. the full-f32 reference.
    assert jnp.allclose(out, ref, atol=2e-2, rtol=2e-2), float(
        jnp.max(jnp.abs(out - ref)))
    # Output rows are L2-normalized.
    assert jnp.allclose(jnp.sum(out * out, axis=1), 1.0, atol=1e-2)
    print("KERNEL_OK")
</pallas_src>

<mosaic_0001>
module attributes {stable_mosaic.version = 11 : i64} {
  func.func @pool_embed_kernel(%arg0: i32, %arg1: memref<4x8x1024xbf16, #tpu.memory_space<vmem>>, %arg2: memref<1024x128xbf16, #tpu.memory_space<vmem>>, %arg3: memref<1x128xf32, #tpu.memory_space<vmem>>, %arg4: memref<8x128xf32, #tpu.memory_space<vmem>>) attributes {dimension_semantics = [#tpu.dimension_semantics<parallel>], iteration_bounds = array<i64: 1>, scalar_prefetch = 0 : i64, scratch_operands = 0 : i64, tpu.core_type = #tpu.core_type<tc>, window_params = [{transform_indices = @transform_0, window_bounds = array<i64: 4, 8, 1024>}, {pipeline_mode = #tpu.pipeline_mode<synchronous>, transform_indices = @transform_1, window_bounds = array<i64: 1024, 128>}, {pipeline_mode = #tpu.pipeline_mode<synchronous>, transform_indices = @transform_2, window_bounds = array<i64: 1, 128>}, {transform_indices = @transform_3, window_bounds = array<i64: 8, 128>}]} {
    %c0 = arith.constant 0 : index
    %c0_0 = arith.constant 0 : index
    %c0_1 = arith.constant 0 : index
    %0 = vector.load %arg1[%c0, %c0_0, %c0_1] : memref<4x8x1024xbf16, #tpu.memory_space<vmem>>, vector<1x8x1024xbf16>
    %1 = vector.shape_cast %0 : vector<1x8x1024xbf16> to vector<8x1024xbf16>
    %c1 = arith.constant 1 : index
    %c0_2 = arith.constant 0 : index
    %c0_3 = arith.constant 0 : index
    %2 = vector.load %arg1[%c1, %c0_2, %c0_3] : memref<4x8x1024xbf16, #tpu.memory_space<vmem>>, vector<1x8x1024xbf16>
    %3 = vector.shape_cast %2 : vector<1x8x1024xbf16> to vector<8x1024xbf16>
    %4 = arith.addf %1, %3 : vector<8x1024xbf16>
    %c2 = arith.constant 2 : index
    %c0_4 = arith.constant 0 : index
    %c0_5 = arith.constant 0 : index
    %5 = vector.load %arg1[%c2, %c0_4, %c0_5] : memref<4x8x1024xbf16, #tpu.memory_space<vmem>>, vector<1x8x1024xbf16>
    %6 = vector.shape_cast %5 : vector<1x8x1024xbf16> to vector<8x1024xbf16>
    %7 = arith.addf %4, %6 : vector<8x1024xbf16>
    %c3 = arith.constant 3 : index
    %c0_6 = arith.constant 0 : index
    %c0_7 = arith.constant 0 : index
    %8 = vector.load %arg1[%c3, %c0_6, %c0_7] : memref<4x8x1024xbf16, #tpu.memory_space<vmem>>, vector<1x8x1024xbf16>
    %9 = vector.shape_cast %8 : vector<1x8x1024xbf16> to vector<8x1024xbf16>
    %10 = arith.addf %7, %9 : vector<8x1024xbf16>
    %c0_8 = arith.constant 0 : index
    %c0_9 = arith.constant 0 : index
    %11 = vector.load %arg2[%c0_8, %c0_9] : memref<1024x128xbf16, #tpu.memory_space<vmem>>, vector<1024x128xbf16>
    %cst = arith.constant dense<0.000000e+00> : vector<8x128xf32>
    %12 = tpu.matmul %10, %11, %cst {dimension_numbers = #tpu.dot_dimension_numbers<[1], [0], [0], [1], [0, 0, 1, 1], [], []>} : vector<8x1024xbf16>, vector<1024x128xbf16>, vector<8x128xf32> -> vector<8x128xf32>
    %c0_10 = arith.constant 0 : index
    %c0_11 = arith.constant 0 : index
    %13 = vector.load %arg3[%c0_10, %c0_11] : memref<1x128xf32, #tpu.memory_space<vmem>>, vector<1x128xf32>
    %14 = vector.broadcast %13 : vector<1x128xf32> to vector<8x128xf32>
    %15 = arith.addf %12, %14 : vector<8x128xf32>
    %16 = arith.mulf %15, %15 : vector<8x128xf32>
    %cst_12 = arith.constant dense<0.000000e+00> : vector<8xf32>
    %17 = vector.multi_reduction <add>, %16, %cst_12 [1] : vector<8x128xf32> to vector<8xf32>
    %18 = vector.shape_cast %17 : vector<8xf32> to vector<8x1xf32>
    %19 = math.rsqrt %18 : vector<8x1xf32>
    %20 = vector.broadcast %19 : vector<8x1xf32> to vector<8x128xf32>
    %21 = arith.mulf %15, %20 : vector<8x128xf32>
    %c0_13 = arith.constant 0 : index
    %c0_14 = arith.constant 0 : index
    %22 = vector.load %arg4[%c0_13, %c0_14] : memref<8x128xf32, #tpu.memory_space<vmem>>, vector<8x128xf32>
    tpu.vector_store %arg4[%c0_13, %c0_14], %21 {strides = array<i32>} : memref<8x128xf32, #tpu.memory_space<vmem>>, vector<8x128xf32>,
    return
  }
  func.func @transform_0(%arg0: i32) -> (i32, i32, i32) {
    %c0_i32 = arith.constant 0 : i32
    %c0_i32_0 = arith.constant 0 : i32
    %c0_i32_1 = arith.constant 0 : i32
    return %c0_i32, %arg0, %c0_i32_0 : i32, i32, i32
  }
  func.func @transform_1(%arg0: i32) -> (i32, i32) {
    %c0_i32 = arith.constant 0 : i32
    %c0_i32_0 = arith.constant 0 : i32
    %c0_i32_1 = arith.constant 0 : i32
    return %c0_i32, %c0_i32_0 : i32, i32
  }
  func.func @transform_2(%arg0: i32) -> (i32, i32) {
    %c0_i32 = arith.constant 0 : i32
    %c0_i32_0 = arith.constant 0 : i32
    %c0_i32_1 = arith.constant 0 : i32
    return %c0_i32, %c0_i32_0 : i32, i32
  }
  func.func @transform_3(%arg0: i32) -> (i32, i32) {
    %c0_i32 = arith.constant 0 : i32
    %c0_i32_0 = arith.constant 0 : i32
    return %arg0, %c0_i32 : i32, i32
  }
}

</mosaic_0001>

<llo_original>
// kernel: tpu_custom_call.1
$region0: #{tpu_custom_call.1}
  #allocation0 [shape = 'u32[]', space=smem, size = 0x4, offset = 0x4, fixed_abs, tag = 'smem constant byte address 0x4 - core index']
  #allocation1 [shape = 'u32[144,128]{1,0:T(1,128)}', space=vmem, size = 0x12000, scoped, tag = 'internal scratch']
  %s0 = inlined_call_operand.hbm [shape: bf16[4,8,1024], index: 0, kind: input, shape index: {}]
  %s1 = inlined_call_operand.hbm [shape: bf16[1024,128], index: 1, kind: input, shape index: {}]
  %s2 = inlined_call_operand.vmem [shape: f32[1,128], index: 2, kind: input, shape index: {}]
  %s3 = inlined_call_operand.hbm [shape: f32[8,128], index: 3, kind: output, shape index: {}]
  %s4 = sld [smem:[#allocation0]]
  $region30: #{tpu_custom_call.1} parent=0
    _
  %s6 = ssub.s32 1, %s4
  %s7 = scalar_select 0, %s6, %s4
  $region1: #{tpu_custom_call.1} parent=0
    #allocation2 [shape = 'u8[65536]{0}', space=vmem, size = 0x10000, scoped, tag = 'input window, operand 0, single buffered']
    #allocation3 [shape = 's32[1]{0}', space=sflag, size = 0x4, scoped, tag = 'scoped memory for tpu_custom_call.1']
    #allocation4 [shape = 's32[1]{0}', space=sflag, size = 0x4, scoped, tag = 'scoped memory for tpu_custom_call.1']
    #allocation5 [shape = 'u8[262144]{0}', space=vmem, size = 0x40000, scoped, tag = 'input window, operand 1, single buffered']
    #allocation6 [shape = 's32[1]{0}', space=sflag, size = 0x4, scoped, tag = 'scoped memory for tpu_custom_call.1']
    #allocation7 [shape = 'u8[4096]{0}', space=vmem, size = 0x1000, scoped, tag = 'output window, operand 0, single buffered']
    %8 = vsyncpa [#allocation3], 0
    %9 = vsyncpa [#allocation6], 0
    %10 = vsyncpa [#allocation4], 0
    // Predicated region
    $region2: #{tpu_custom_call.1} parent=1 // pred_check
      _
    $region3: #{tpu_custom_call.1} parent=1 // pred_check_branch
      %12 = sbr.rel (0) target = $region5
    $region4: #{tpu_custom_call.1} parent=1 // pred_region
      %s14 = ssub.s32 2048, 2048
      %15 = vsyncadd [#allocation3], %s14
      %s16 = sshll.u32 [#allocation2], 4
      %s17 = int_to_ptr.vmem [resolvable:$true] %s16
      %22 = dma.hbm_to_vmem [thread:$0]  %s0, 2048, %s17, [#allocation3], 512, 512, 32
    $region5: #{tpu_custom_call.1} parent=1 // pred_fallthru
      _
    // Predicated region
    $region6: #{tpu_custom_call.1} parent=1 // pred_check
      _
    $region7: #{tpu_custom_call.1} parent=1 // pred_check_branch
      %24 = sbr.rel (0) target = $region9
    $region8: #{tpu_custom_call.1} parent=1 // pred_region
      %s26 = ssub.s32 8192, 8192
      %27 = vsyncadd [#allocation6], %s26
      %s28 = sshll.u32 [#allocation5], 4
      %s29 = int_to_ptr.vmem [resolvable:$true] %s28
      %34 = dma.hbm_to_vmem [thread:$0]  %s1, 8192, %s29, [#allocation6], 64, 64, 4
    $region9: #{tpu_custom_call.1} parent=1 // pred_fallthru
      _
    // Predicated region
    $region10: #{tpu_custom_call.1} parent=1 // pred_check
      _
    $region11: #{tpu_custom_call.1} parent=1 // pred_check_branch
      %36 = sbr.rel (0) target = $region13
    $region12: #{tpu_custom_call.1} parent=1 // pred_region
      _
    $region13: #{tpu_custom_call.1} parent=1 // pred_fallthru
      _
    // Predicated region
    $region14: #{tpu_custom_call.1} parent=1 // pred_check
      _
    $region15: #{tpu_custom_call.1} parent=1 // pred_check_branch
      %38 = sbr.rel (0) target = $region17
    $region16: #{tpu_custom_call.1} parent=1 // pred_region
      %39 = dma.done [#allocation3], 2048
    $region17: #{tpu_custom_call.1} parent=1 // pred_fallthru
      _
    // Predicated region
    $region18: #{tpu_custom_call.1} parent=1 // pred_check
      _
    $region19: #{tpu_custom_call.1} parent=1 // pred_check_branch
      %41 = sbr.rel (0) target = $region21
    $region20: #{tpu_custom_call.1} parent=1 // pred_region
      %42 = dma.done [#allocation6], 8192
    $region21: #{tpu_custom_call.1} parent=1 // pred_fallthru
      _
    %v44 = vld [vmem:[#allocation2] sm:$0xff]
    %v45 = vld [vmem:[#allocation2 + $0x8] sm:$0xff]
    %v46 = vld [vmem:[#allocation2 + $0x10] sm:$0xff]
    %v47 = vld [vmem:[#allocation2 + $0x18] sm:$0xff]
    %s48 = scalar_lea.vmem [#allocation2], 32
    %v49 = vld [vmem:[%s48] sm:$0xff]
    %v50 = vld [vmem:[%s48 + $0x8] sm:$0xff]
    %v51 = vld [vmem:[%s48 + $0x10] sm:$0xff]
    %v52 = vld [vmem:[%s48 + $0x18] sm:$0xff]
    %v53 = vadd.bf16 %v44, %v49
    %v54 = vadd.bf16 %v45, %v50
    %v55 = vadd.bf16 %v46, %v51
    %v56 = vadd.bf16 %v47, %v52
    %s57 = scalar_lea.vmem [#allocation2], 64
    %v58 = vld [vmem:[%s57] sm:$0xff]
    %v59 = vld [vmem:[%s57 + $0x8] sm:$0xff]
    %v60 = vld [vmem:[%s57 + $0x10] sm:$0xff]
    %v61 = vld [vmem:[%s57 + $0x18] sm:$0xff]
    %v62 = vadd.bf16 %v53, %v58
    %v63 = vadd.bf16 %v54, %v59
    %v64 = vadd.bf16 %v55, %v60
    %v65 = vadd.bf16 %v56, %v61
    %s66 = scalar_lea.vmem [#allocation2], 96
    %v67 = vld [vmem:[%s66] sm:$0xff]
    %v68 = vld [vmem:[%s66 + $0x8] sm:$0xff]
    %v69 = vld [vmem:[%s66 + $0x10] sm:$0xff]
    %v70 = vld [vmem:[%s66 + $0x18] sm:$0xff]
    %v71 = vadd.bf16 %v62, %v67
    %v72 = vadd.bf16 %v63, %v68
    %v73 = vadd.bf16 %v64, %v69
    %v74 = vadd.bf16 %v65, %v70
    %v75 = vld [vmem:[#allocation5] sm:$0xf]
    %v76 = vld [vmem:[#allocation5 + $0x4] sm:$0xf]
    %v77 = vld [vmem:[#allocation5 + $0x8] sm:$0xf]
    %v78 = vld [vmem:[#allocation5 + $0xc] sm:$0xf]
    %v79 = vld [vmem:[#allocation5 + $0x10] sm:$0xf]
    %v80 = vld [vmem:[#allocation5 + $0x14] sm:$0xf]
    %v81 = vld [vmem:[#allocation5 + $0x18] sm:$0xf]
    %v82 = vld [vmem:[#allocation5 + $0x1c] sm:$0xf]
    %v83 = vld [vmem:[#allocation5 + $0x20] sm:$0xf]
    %v84 = vld [vmem:[#allocation5 + $0x24] sm:$0xf]
    %v85 = vld [vmem:[#allocation5 + $0x28] sm:$0xf]
    %v86 = vld [vmem:[#allocation5 + $0x2c] sm:$0xf]
    %v87 = vld [vmem:[#allocation5 + $0x30] sm:$0xf]
    %v88 = vld [vmem:[#allocation5 + $0x34] sm:$0xf]
    %v89 = vld [vmem:[#allocation5 + $0x38] sm:$0xf]
    %v90 = vld [vmem:[#allocation5 + $0x3c] sm:$0xf]
    %v91 = vld [vmem:[#allocation5 + $0x40] sm:$0xf]
    %v92 = vld [vmem:[#allocation5 + $0x44] sm:$0xf]
    %v93 = vld [vmem:[#allocation5 + $0x48] sm:$0xf]
    %v94 = vld [vmem:[#allocation5 + $0x4c] sm:$0xf]
    %v95 = vld [vmem:[#allocation5 + $0x50] sm:$0xf]
    %v96 = vld [vmem:[#allocation5 + $0x54] sm:$0xf]
    %v97 = vld [vmem:[#allocation5 + $0x58] sm:$0xf]
    %v98 = vld [vmem:[#allocation5 + $0x5c] sm:$0xf]
    %v99 = vld [vmem:[#allocation5 + $0x60] sm:$0xf]
    %v100 = vld [vmem:[#allocation5 + $0x64] sm:$0xf]
    %v101 = vld [vmem:[#allocation5 + $0x68] sm:$0xf]
    %v102 = vld [vmem:[#allocation5 + $0x6c] sm:$0xf]
    %v103 = vld [vmem:[#allocation5 + $0x70] sm:$0xf]
    %v104 = vld [vmem:[#allocation5 + $0x74] sm:$0xf]
    %v105 = vld [vmem:[#allocation5 + $0x78] sm:$0xf]
    %v106 = vld [vmem:[#allocation5 + $0x7c] sm:$0xf]
    %v107 = vld [vmem:[#allocation5 + $0x80] sm:$0xf]
    %v108 = vld [vmem:[#allocation5 + $0x84] sm:$0xf]
    %v109 = vld [vmem:[#allocation5 + $0x88] sm:$0xf]
    %v110 = vld [vmem:[#allocation5 + $0x8c] sm:$0xf]
    %v111 = vld [vmem:[#allocation5 + $0x90] sm:$0xf]
    %v112 = vld [vmem:[#allocation5 + $0x94] sm:$0xf]
    %v113 = vld [vmem:[#allocation5 + $0x98] sm:$0xf]
    %v114 = vld [vmem:[#allocation5 + $0x9c] sm:$0xf]
    %v115 = vld [vmem:[#allocation5 + $0xa0] sm:$0xf]
    %v116 = vld [vmem:[#allocation5 + $0xa4] sm:$0xf]
    %v117 = vld [vmem:[#allocation5 + $0xa8] sm:$0xf]
    %v118 = vld [vmem:[#allocation5 + $0xac] sm:$0xf]
    %v119 = vld [vmem:[#allocation5 + $0xb0] sm:$0xf]
    %v120 = vld [vmem:[#allocation5 + $0xb4] sm:$0xf]
    %v121 = vld [vmem:[#allocation5 + $0xb8] sm:$0xf]
    %v122 = vld [vmem:[#allocation5 + $0xbc] sm:$0xf]
    %v123 = vld [vmem:[#allocation5 + $0xc0] sm:$0xf]
    %v124 = vld [vmem:[#allocation5 + $0xc4] sm:$0xf]
    %v125 = vld [vmem:[#allocation5 + $0xc8] sm:$0xf]
    %v126 = vld [vmem:[#allocation5 + $0xcc] sm:$0xf]
    %v127 = vld [vmem:[#allocation5 + $0xd0] sm:$0xf]
    %v128 = vld [vmem:[#allocation5 + $0xd4] sm:$0xf]
    %v129 = vld [vmem:[#allocation5 + $0xd8] sm:$0xf]
    %v130 = vld [vmem:[#allocation5 + $0xdc] sm:$0xf]
    %v131 = vld [vmem:[#allocation5 + $0xe0] sm:$0xf]
    %v132 = vld [vmem:[#allocation5 + $0xe4] sm:$0xf]
    %v133 = vld [vmem:[#allocation5 + $0xe8] sm:$0xf]
    %v134 = vld [vmem:[#allocation5 + $0xec] sm:$0xf]
    %v135 = vld [vmem:[#allocation5 + $0xf0] sm:$0xf]
    %v136 = vld [vmem:[#allocation5 + $0xf4] sm:$0xf]
    %v137 = vld [vmem:[#allocation5 + $0xf8] sm:$0xf]
    %v138 = vld [vmem:[#allocation5 + $0xfc] sm:$0xf]
    %v139 = vld [vmem:[#allocation5 + $0x100] sm:$0xf]
    %v140 = vld [vmem:[#allocation5 + $0x104] sm:$0xf]
    %v141 = vld [vmem:[#allocation5 + $0x108] sm:$0xf]
    %v142 = vld [vmem:[#allocation5 + $0x10c] sm:$0xf]
    %v143 = vld [vmem:[#allocation5 + $0x110] sm:$0xf]
    %v144 = vld [vmem:[#allocation5 + $0x114] sm:$0xf]
    %v145 = vld [vmem:[#allocation5 + $0x118] sm:$0xf]
    %v146 = vld [vmem:[#allocation5 + $0x11c] sm:$0xf]
    %v147 = vld [vmem:[#allocation5 + $0x120] sm:$0xf]
    %v148 = vld [vmem:[#allocation5 + $0x124] sm:$0xf]
    %v149 = vld [vmem:[#allocation5 + $0x128] sm:$0xf]
    %v150 = vld [vmem:[#allocation5 + $0x12c] sm:$0xf]
    %v151 = vld [vmem:[#allocation5 + $0x130] sm:$0xf]
    %v152 = vld [vmem:[#allocation5 + $0x134] sm:$0xf]
    %v153 = vld [vmem:[#allocation5 + $0x138] sm:$0xf]
    %v154 = vld [vmem:[#allocation5 + $0x13c] sm:$0xf]
    %v155 = vld [vmem:[#allocation5 + $0x140] sm:$0xf]
    %v156 = vld [vmem:[#allocation5 + $0x144] sm:$0xf]
    %v157 = vld [vmem:[#allocation5 + $0x148] sm:$0xf]
    %v158 = vld [vmem:[#allocation5 + $0x14c] sm:$0xf]
    %v159 = vld [vmem:[#allocation5 + $0x150] sm:$0xf]
    %v160 = vld [vmem:[#allocation5 + $0x154] sm:$0xf]
    %v161 = vld [vmem:[#allocation5 + $0x158] sm:$0xf]
    %v162 = vld [vmem:[#allocation5 + $0x15c] sm:$0xf]
    %v163 = vld [vmem:[#allocation5 + $0x160] sm:$0xf]
    %v164 = vld [vmem:[#allocation5 + $0x164] sm:$0xf]
    %v165 = vld [vmem:[#allocation5 + $0x168] sm:$0xf]
    %v166 = vld [vmem:[#allocation5 + $0x16c] sm:$0xf]
    %v167 = vld [vmem:[#allocation5 + $0x170] sm:$0xf]
    %v168 = vld [vmem:[#allocation5 + $0x174] sm:$0xf]
    %v169 = vld [vmem:[#allocation5 + $0x178] sm:$0xf]
    %v170 = vld [vmem:[#allocation5 + $0x17c] sm:$0xf]
    %v171 = vld [vmem:[#allocation5 + $0x180] sm:$0xf]
    %v172 = vld [vmem:[#allocation5 + $0x184] sm:$0xf]
    %v173 = vld [vmem:[#allocation5 + $0x188] sm:$0xf]
    %v174 = vld [vmem:[#allocation5 + $0x18c] sm:$0xf]
    %v175 = vld [vmem:[#allocation5 + $0x190] sm:$0xf]
    %v176 = vld [vmem:[#allocation5 + $0x194] sm:$0xf]
    %v177 = vld [vmem:[#allocation5 + $0x198] sm:$0xf]
    %v178 = vld [vmem:[#allocation5 + $0x19c] sm:$0xf]
    %v179 = vld [vmem:[#allocation5 + $0x1a0] sm:$0xf]
    %v180 = vld [vmem:[#allocation5 + $0x1a4] sm:$0xf]
    %v181 = vld [vmem:[#allocation5 + $0x1a8] sm:$0xf]
    %v182 = vld [vmem:[#allocation5 + $0x1ac] sm:$0xf]
    %v183 = vld [vmem:[#allocation5 + $0x1b0] sm:$0xf]
    %v184 = vld [vmem:[#allocation5 + $0x1b4] sm:$0xf]
    %v185 = vld [vmem:[#allocation5 + $0x1b8] sm:$0xf]
    %v186 = vld [vmem:[#allocation5 + $0x1bc] sm:$0xf]
    %v187 = vld [vmem:[#allocation5 + $0x1c0] sm:$0xf]
    %v188 = vld [vmem:[#allocation5 + $0x1c4] sm:$0xf]
    %v189 = vld [vmem:[#allocation5 + $0x1c8] sm:$0xf]
    %v190 = vld [vmem:[#allocation5 + $0x1cc] sm:$0xf]
    %v191 = vld [vmem:[#allocation5 + $0x1d0] sm:$0xf]
    %v192 = vld [vmem:[#allocation5 + $0x1d4] sm:$0xf]
    %v193 = vld [vmem:[#allocation5 + $0x1d8] sm:$0xf]
    %v194 = vld [vmem:[#allocation5 + $0x1dc] sm:$0xf]
    %v195 = vld [vmem:[#allocation5 + $0x1e0] sm:$0xf]
    %v196 = vld [vmem:[#allocation5 + $0x1e4] sm:$0xf]
    %v197 = vld [vmem:[#allocation5 + $0x1e8] sm:$0xf]
    %v198 = vld [vmem:[#allocation5 + $0x1ec] sm:$0xf]
    %v199 = vld [vmem:[#allocation5 + $0x1f0] sm:$0xf]
    %v200 = vld [vmem:[#allocation5 + $0x1f4] sm:$0xf]
    %v201 = vld [vmem:[#allocation5 + $0x1f8] sm:$0xf]
    %v202 = vld [vmem:[#allocation5 + $0x1fc] sm:$0xf]
    %v203 = vld [vmem:[%s2] sm:$0x1]
    %v205 = vlaneseq
    %v206 = vshrl.u32 %v205, 7
    %v207 = vsub.s32 0, %v206
    %v208 = vrot.slane %v203, %v207
    %v214 = vunpack.c.l.b16 %v71
    %v215 = vunpack.c.h.b16 %v71
    %v216 = vunpack.c.l.b16 %v72
    %v217 = vunpack.c.h.b16 %v72
    %v218 = vunpack.c.l.b16 %v73
    %v219 = vunpack.c.h.b16 %v73
    %v220 = vunpack.c.l.b16 %v74
    %v221 = vunpack.c.h.b16 %v74
    %v222 = vpack.c.b16 %v214, %v214
    %v223 = vpack.c.b16 %v215, %v215
    %v224 = vpack.c.b16 %v216, %v216
    %v225 = vpack.c.b16 %v217, %v217
    %v226 = vpack.c.b16 %v218, %v218
    %v227 = vpack.c.b16 %v219, %v219
    %v228 = vpack.c.b16 %v220, %v220
    %v229 = vpack.c.b16 %v221, %v221
    %v366 = vunpack.c.l.b16 %v75
    %v367 = vunpack.c.l.b16 %v76
    %v368 = vunpack.c.l.b16 %v77
    %v369 = vunpack.c.l.b16 %v78
    %v370 = vunpack.c.l.b16 %v79
    %v371 = vunpack.c.l.b16 %v80
    %v372 = vunpack.c.l.b16 %v81
    %v373 = vunpack.c.l.b16 %v82
    %v374 = vunpack.c.l.b16 %v83
    %v375 = vunpack.c.l.b16 %v84
    %v376 = vunpack.c.l.b16 %v85
    %v377 = vunpack.c.l.b16 %v86
    %v378 = vunpack.c.l.b16 %v87
    %v379 = vunpack.c.l.b16 %v88
    %v380 = vunpack.c.l.b16 %v89
    %v381 = vunpack.c.l.b16 %v90
    %v382 = vunpack.c.l.b16 %v91
    %v383 = vunpack.c.l.b16 %v92
    %v384 = vunpack.c.l.b16 %v93
    %v385 = vunpack.c.l.b16 %v94
    %v386 = vunpack.c.l.b16 %v95
    %v387 = vunpack.c.l.b16 %v96
    %v388 = vunpack.c.l.b16 %v97
    %v389 = vunpack.c.l.b16 %v98
    %v390 = vunpack.c.l.b16 %v99
    %v391 = vunpack.c.l.b16 %v100
    %v392 = vunpack.c.l.b16 %v101
    %v393 = vunpack.c.l.b16 %v102
    %v394 = vunpack.c.l.b16 %v103
    %v395 = vunpack.c.l.b16 %v104
    %v396 = vunpack.c.l.b16 %v105
    %v397 = vunpack.c.l.b16 %v106
    %v398 = vunpack.c.l.b16 %v107
    %v399 = vunpack.c.l.b16 %v108
    %v400 = vunpack.c.l.b16 %v109
    %v401 = vunpack.c.l.b16 %v110
    %v402 = vunpack.c.l.b16 %v111
    %v403 = vunpack.c.l.b16 %v112
    %v404 = vunpack.c.l.b16 %v113
    %v405 = vunpack.c.l.b16 %v114
    %v406 = vunpack.c.l.b16 %v115
    %v407 = vunpack.c.l.b16 %v116
    %v408 = vunpack.c.l.b16 %v117
    %v409 = vunpack.c.l.b16 %v118
    %v410 = vunpack.c.l.b16 %v119
    %v411 = vunpack.c.l.b16 %v120
    %v412 = vunpack.c.l.b16 %v121
    %v413 = vunpack.c.l.b16 %v122
    %v414 = vunpack.c.l.b16 %v123
    %v415 = vunpack.c.l.b16 %v124
    %v416 = vunpack.c.l.b16 %v125
    %v417 = vunpack.c.l.b16 %v126
    %v418 = vunpack.c.l.b16 %v127
    %v419 = vunpack.c.l.b16 %v128
    %v420 = vunpack.c.l.b16 %v129
    %v421 = vunpack.c.l.b16 %v130
    %v422 = vunpack.c.l.b16 %v131
    %v423 = vunpack.c.l.b16 %v132
    %v424 = vunpack.c.l.b16 %v133
    %v425 = vunpack.c.l.b16 %v134
    %v426 = vunpack.c.l.b16 %v135
    %v427 = vunpack.c.l.b16 %v136
    %v428 = vunpack.c.l.b16 %v137
    %v429 = vunpack.c.l.b16 %v138
    %v430 = vunpack.c.l.b16 %v139
    %v431 = vunpack.c.l.b16 %v140
    %v432 = vunpack.c.l.b16 %v141
    %v433 = vunpack.c.l.b16 %v142
    %v434 = vunpack.c.l.b16 %v143
    %v435 = vunpack.c.l.b16 %v144
    %v436 = vunpack.c.l.b16 %v145
    %v437 = vunpack.c.l.b16 %v146
    %v438 = vunpack.c.l.b16 %v147
    %v439 = vunpack.c.l.b16 %v148
    %v440 = vunpack.c.l.b16 %v149
    %v441 = vunpack.c.l.b16 %v150
    %v442 = vunpack.c.l.b16 %v151
    %v443 = vunpack.c.l.b16 %v152
    %v444 = vunpack.c.l.b16 %v153
    %v445 = vunpack.c.l.b16 %v154
    %v446 = vunpack.c.l.b16 %v155
    %v447 = vunpack.c.l.b16 %v156
    %v448 = vunpack.c.l.b16 %v157
    %v449 = vunpack.c.l.b16 %v158
    %v450 = vunpack.c.l.b16 %v159
    %v451 = vunpack.c.l.b16 %v160
    %v452 = vunpack.c.l.b16 %v161
    %v453 = vunpack.c.l.b16 %v162
    %v454 = vunpack.c.l.b16 %v163
    %v455 = vunpack.c.l.b16 %v164
    %v456 = vunpack.c.l.b16 %v165
    %v457 = vunpack.c.l.b16 %v166
    %v458 = vunpack.c.l.b16 %v167
    %v459 = vunpack.c.l.b16 %v168
    %v460 = vunpack.c.l.b16 %v169
    %v461 = vunpack.c.l.b16 %v170
    %v462 = vunpack.c.l.b16 %v171
    %v463 = vunpack.c.l.b16 %v172
    %v464 = vunpack.c.l.b16 %v173
    %v465 = vunpack.c.l.b16 %v174
    %v466 = vunpack.c.l.b16 %v175
    %v467 = vunpack.c.l.b16 %v176
    %v468 = vunpack.c.l.b16 %v177
    %v469 = vunpack.c.l.b16 %v178
    %v470 = vunpack.c.l.b16 %v179
    %v471 = vunpack.c.l.b16 %v180
    %v472 = vunpack.c.l.b16 %v181
    %v473 = vunpack.c.l.b16 %v182
    %v474 = vunpack.c.l.b16 %v183
    %v475 = vunpack.c.l.b16 %v184
    %v476 = vunpack.c.l.b16 %v185
    %v477 = vunpack.c.l.b16 %v186
    %v478 = vunpack.c.l.b16 %v187
    %v479 = vunpack.c.l.b16 %v188
    %v480 = vunpack.c.l.b16 %v189
    %v481 = vunpack.c.l.b16 %v190
    %v482 = vunpack.c.l.b16 %v191
    %v483 = vunpack.c.l.b16 %v192
    %v484 = vunpack.c.l.b16 %v193
    %v485 = vunpack.c.l.b16 %v194
    %v486 = vunpack.c.l.b16 %v195
    %v487 = vunpack.c.l.b16 %v196
    %v488 = vunpack.c.l.b16 %v197
    %v489 = vunpack.c.l.b16 %v198
    %v490 = vunpack.c.l.b16 %v199
    %v491 = vunpack.c.l.b16 %v200
    %v492 = vunpack.c.l.b16 %v201
    %v493 = vunpack.c.l.b16 %v202
    %v494 = vpack.c.b16 %v367, %v366
    %v495 = vpack.c.b16 %v369, %v368
    %v496 = vpack.c.b16 %v371, %v370
    %v497 = vpack.c.b16 %v373, %v372
    %v498 = vpack.c.b16 %v375, %v374
    %v499 = vpack.c.b16 %v377, %v376
    %v500 = vpack.c.b16 %v379, %v378
    %v501 = vpack.c.b16 %v381, %v380
    %v502 = vpack.c.b16 %v383, %v382
    %v503 = vpack.c.b16 %v385, %v384
    %v504 = vpack.c.b16 %v387, %v386
    %v505 = vpack.c.b16 %v389, %v388
    %v506 = vpack.c.b16 %v391, %v390
    %v507 = vpack.c.b16 %v393, %v392
    %v508 = vpack.c.b16 %v395, %v394
    %v509 = vpack.c.b16 %v397, %v396
    %v510 = vpack.c.b16 %v399, %v398
    %v511 = vpack.c.b16 %v401, %v400
    %v512 = vpack.c.b16 %v403, %v402
    %v513 = vpack.c.b16 %v405, %v404
    %v514 = vpack.c.b16 %v407, %v406
    %v515 = vpack.c.b16 %v409, %v408
    %v516 = vpack.c.b16 %v411, %v410
    %v517 = vpack.c.b16 %v413, %v412
    %v518 = vpack.c.b16 %v415, %v414
    %v519 = vpack.c.b16 %v417, %v416
    %v520 = vpack.c.b16 %v419, %v418
    %v521 = vpack.c.b16 %v421, %v420
    %v522 = vpack.c.b16 %v423, %v422
    %v523 = vpack.c.b16 %v425, %v424
    %v524 = vpack.c.b16 %v427, %v426
    %v525 = vpack.c.b16 %v429, %v428
    %v526 = vpack.c.b16 %v431, %v430
    %v527 = vpack.c.b16 %v433, %v432
    %v528 = vpack.c.b16 %v435, %v434
    %v529 = vpack.c.b16 %v437, %v436
    %v530 = vpack.c.b16 %v439, %v438
    %v531 = vpack.c.b16 %v441, %v440
    %v532 = vpack.c.b16 %v443, %v442
    %v533 = vpack.c.b16 %v445, %v444
    %v534 = vpack.c.b16 %v447, %v446
    %v535 = vpack.c.b16 %v449, %v448
    %v536 = vpack.c.b16 %v451, %v450
    %v537 = vpack.c.b16 %v453, %v452
    %v538 = vpack.c.b16 %v455, %v454
    %v539 = vpack.c.b16 %v457, %v456
    %v540 = vpack.c.b16 %v459, %v458
    %v541 = vpack.c.b16 %v461, %v460
    %v542 = vpack.c.b16 %v463, %v462
    %v543 = vpack.c.b16 %v465, %v464
    %v544 = vpack.c.b16 %v467, %v466
    %v545 = vpack.c.b16 %v469, %v468
    %v546 = vpack.c.b16 %v471, %v470
    %v547 = vpack.c.b16 %v473, %v472
    %v548 = vpack.c.b16 %v475, %v474
    %v549 = vpack.c.b16 %v477, %v476
    %v550 = vpack.c.b16 %v479, %v478
    %v551 = vpack.c.b16 %v481, %v480
    %v552 = vpack.c.b16 %v483, %v482
    %v553 = vpack.c.b16 %v485, %v484
    %v554 = vpack.c.b16 %v487, %v486
    %v555 = vpack.c.b16 %v489, %v488
    %v556 = vpack.c.b16 %v491, %v490
    %v557 = vpack.c.b16 %v493, %v492
    %622 = vmatprep.subr.bf16.mxu0 0
    %623 = vmatpush1.bf16.msra.mxu0 %v494
    %624 = vmatprep.subr.bf16.mxu0 0
    %625 = vmatpush1.bf16.msra.mxu0 %v495
    %626 = vmatprep.subr.bf16.mxu0 0
    %627 = vmatpush1.bf16.msra.mxu0 %v496
    %628 = vmatprep.subr.bf16.mxu0 0
    %629 = vmatpush1.bf16.msra.mxu0 %v497
    %630 = vmatprep.subr.bf16.mxu0 0
    %631 = vmatpush1.bf16.msra.mxu0 %v498
    %632 = vmatprep.subr.bf16.mxu0 0
    %633 = vmatpush1.bf16.msra.mxu0 %v499
    %634 = vmatprep.subr.bf16.mxu0 0
    %635 = vmatpush1.bf16.msra.mxu0 %v500
    %636 = vmatprep.subr.bf16.mxu0 0
    %637 = vmatpush1.bf16.msra.mxu0 %v501
    %638 = vmatprep.subr.bf16.mxu0 0
    %639 = vmatpush1.bf16.msra.mxu0 %v502
    %640 = vmatprep.subr.bf16.mxu0 0
    %641 = vmatpush1.bf16.msra.mxu0 %v503
    %642 = vmatprep.subr.bf16.mxu0 0
    %643 = vmatpush1.bf16.msra.mxu0 %v504
    %644 = vmatprep.subr.bf16.mxu0 0
    %645 = vmatpush1.bf16.msra.mxu0 %v505
    %646 = vmatprep.subr.bf16.mxu0 0
    %647 = vmatpush1.bf16.msra.mxu0 %v506
    %648 = vmatprep.subr.bf16.mxu0 0
    %649 = vmatpush1.bf16.msra.mxu0 %v507
    %650 = vmatprep.subr.bf16.mxu0 0
    %651 = vmatpush1.bf16.msra.mxu0 %v508
    %652 = vmatprep.subr.bf16.mxu0 0
    %653 = vmatpush1.bf16.msra.mxu0 %v509
    %654 = vmatprep.mubr.bf16.mxu0 %v223
    %655 = vmatmul.mubr.bf16.gmra.mrb[0].mxu0 %v222
    %v656 = vpop.f32.mrb[0].mxu0
    %v657 = vadd.f32 %v208, %v656
    %v658 = vpop.f32.mrb[0].mxu0
    %v659 = vpop.f32.mrb[0].mxu0
    %v660 = vpop.f32.mrb[0].mxu0
    %661 = vdwg.mxu0
    %662 = vmatprep.subr.bf16.mxu0 0
    %663 = vmatpush1.bf16.msra.mxu0 %v510
    %664 = vmatprep.subr.bf16.mxu0 0
    %665 = vmatpush1.bf16.msra.mxu0 %v511
    %666 = vmatprep.subr.bf16.mxu0 0
    %667 = vmatpush1.bf16.msra.mxu0 %v512
    %668 = vmatprep.subr.bf16.mxu0 0
    %669 = vmatpush1.bf16.msra.mxu0 %v513
    %670 = vmatprep.subr.bf16.mxu0 0
    %671 = vmatpush1.bf16.msra.mxu0 %v514
    %672 = vmatprep.subr.bf16.mxu0 0
    %673 = vmatpush1.bf16.msra.mxu0 %v515
    %674 = vmatprep.subr.bf16.mxu0 0
    %675 = vmatpush1.bf16.msra.mxu0 %v516
    %676 = vmatprep.subr.bf16.mxu0 0
    %677 = vmatpush1.bf16.msra.mxu0 %v517
    %678 = vmatprep.subr.bf16.mxu0 0
    %679 = vmatpush1.bf16.msra.mxu0 %v518
    %680 = vmatprep.subr.bf16.mxu0 0
    %681 = vmatpush1.bf16.msra.mxu0 %v519
    %682 = vmatprep.subr.bf16.mxu0 0
    %683 = vmatpush1.bf16.msra.mxu0 %v520
    %684 = vmatprep.subr.bf16.mxu0 0
    %685 = vmatpush1.bf16.msra.mxu0 %v521
    %686 = vmatprep.subr.bf16.mxu0 0
    %687 = vmatpush1.bf16.msra.mxu0 %v522
    %688 = vmatprep.subr.bf16.mxu0 0
    %689 = vmatpush1.bf16.msra.mxu0 %v523
    %690 = vmatprep.subr.bf16.mxu0 0
    %691 = vmatpush1.bf16.msra.mxu0 %v524
    %692 = vmatprep.subr.bf16.mxu0 0
    %693 = vmatpush1.bf16.msra.mxu0 %v525
    %694 = vmatprep.mubr.bf16.mxu0 %v225
    %695 = vmatmul.mubr.bf16.gmra.mrb[0].mxu0 %v224
    %v696 = vpop.f32.mrb[0].mxu0
    %v697 = vadd.f32 %v657, %v696
    %v698 = vpop.f32.mrb[0].mxu0
    %v699 = vpop.f32.mrb[0].mxu0
    %v700 = vpop.f32.mrb[0].mxu0
    %701 = vdwg.mxu0
    %702 = vmatprep.subr.bf16.mxu0 0
    %703 = vmatpush1.bf16.msra.mxu0 %v526
    %704 = vmatprep.subr.bf16.mxu0 0
    %705 = vmatpush1.bf16.msra.mxu0 %v527
    %706 = vmatprep.subr.bf16.mxu0 0
    %707 = vmatpush1.bf16.msra.mxu0 %v528
    %708 = vmatprep.subr.bf16.mxu0 0
    %709 = vmatpush1.bf16.msra.mxu0 %v529
    %710 = vmatprep.subr.bf16.mxu0 0
    %711 = vmatpush1.bf16.msra.mxu0 %v530
    %712 = vmatprep.subr.bf16.mxu0 0
    %713 = vmatpush1.bf16.msra.mxu0 %v531
    %714 = vmatprep.subr.bf16.mxu0 0
    %715 = vmatpush1.bf16.msra.mxu0 %v532
    %716 = vmatprep.subr.bf16.mxu0 0
    %717 = vmatpush1.bf16.msra.mxu0 %v533
    %718 = vmatprep.subr.bf16.mxu0 0
    %719 = vmatpush1.bf16.msra.mxu0 %v534
    %720 = vmatprep.subr.bf16.mxu0 0
    %721 = vmatpush1.bf16.msra.mxu0 %v535
    %722 = vmatprep.subr.bf16.mxu0 0
    %723 = vmatpush1.bf16.msra.mxu0 %v536
    %724 = vmatprep.subr.bf16.mxu0 0
    %725 = vmatpush1.bf16.msra.mxu0 %v537
    %726 = vmatprep.subr.bf16.mxu0 0
    %727 = vmatpush1.bf16.msra.mxu0 %v538
    %728 = vmatprep.subr.bf16.mxu0 0
    %729 = vmatpush1.bf16.msra.mxu0 %v539
    %730 = vmatprep.subr.bf16.mxu0 0
    %731 = vmatpush1.bf16.msra.mxu0 %v540
    %732 = vmatprep.subr.bf16.mxu0 0
    %733 = vmatpush1.bf16.msra.mxu0 %v541
    %734 = vmatprep.mubr.bf16.mxu0 %v227
    %735 = vmatmul.mubr.bf16.gmra.mrb[0].mxu0 %v226
    %v736 = vpop.f32.mrb[0].mxu0
    %v737 = vadd.f32 %v697, %v736
    %v738 = vpop.f32.mrb[0].mxu0
    %v739 = vpop.f32.mrb[0].mxu0
    %v740 = vpop.f32.mrb[0].mxu0
    %741 = vdwg.mxu0
    %742 = vmatprep.subr.bf16.mxu0 0
    %743 = vmatpush1.bf16.msra.mxu0 %v542
    %744 = vmatprep.subr.bf16.mxu0 0
    %745 = vmatpush1.bf16.msra.mxu0 %v543
    %746 = vmatprep.subr.bf16.mxu0 0
    %747 = vmatpush1.bf16.msra.mxu0 %v544
    %748 = vmatprep.subr.bf16.mxu0 0
    %749 = vmatpush1.bf16.msra.mxu0 %v545
    %750 = vmatprep.subr.bf16.mxu0 0
    %751 = vmatpush1.bf16.msra.mxu0 %v546
    %752 = vmatprep.subr.bf16.mxu0 0
    %753 = vmatpush1.bf16.msra.mxu0 %v547
    %754 = vmatprep.subr.bf16.mxu0 0
    %755 = vmatpush1.bf16.msra.mxu0 %v548
    %756 = vmatprep.subr.bf16.mxu0 0
    %757 = vmatpush1.bf16.msra.mxu0 %v549
    %758 = vmatprep.subr.bf16.mxu0 0
    %759 = vmatpush1.bf16.msra.mxu0 %v550
    %760 = vmatprep.subr.bf16.mxu0 0
    %761 = vmatpush1.bf16.msra.mxu0 %v551
    %762 = vmatprep.subr.bf16.mxu0 0
    %763 = vmatpush1.bf16.msra.mxu0 %v552
    %764 = vmatprep.subr.bf16.mxu0 0
    %765 = vmatpush1.bf16.msra.mxu0 %v553
    %766 = vmatprep.subr.bf16.mxu0 0
    %767 = vmatpush1.bf16.msra.mxu0 %v554
    %768 = vmatprep.subr.bf16.mxu0 0
    %769 = vmatpush1.bf16.msra.mxu0 %v555
    %770 = vmatprep.subr.bf16.mxu0 0
    %771 = vmatpush1.bf16.msra.mxu0 %v556
    %772 = vmatprep.subr.bf16.mxu0 0
    %773 = vmatpush1.bf16.msra.mxu0 %v557
    %774 = vmatprep.mubr.bf16.mxu0 %v229
    %775 = vmatmul.mubr.bf16.gmra.mrb[0].mxu0 %v228
    %v776 = vpop.f32.mrb[0].mxu0
    %v777 = vadd.f32 %v737, %v776
    %v778 = vpop.f32.mrb[0].mxu0
    %v779 = vpop.f32.mrb[0].mxu0
    %v780 = vpop.f32.mrb[0].mxu0
    %781 = vdwg.mxu0
    %v782 = vmul.f32 %v777, %v777
    %783 = vadd.xlane.f32.xlu0 %v782
    %v784 = vpop.xlane.xlu0 %783
    %v785 = vrsqrt.pop %v784
    %v786 = vmul.f32 %v777, %v785
    %787 = vst [vmem:[#allocation7] sm:$0xff] %v786
    // Predicated region
    $region22: #{tpu_custom_call.1} parent=1 // pred_check
      _
    $region23: #{tpu_custom_call.1} parent=1 // pred_check_branch
      %789 = sbr.rel (0) target = $region25
    $region24: #{tpu_custom_call.1} parent=1 // pred_region
      %s791 = ssub.s32 128, 128
      %792 = vsyncadd [#allocation4], %s791
      %s794 = sshll.u32 [#allocation7], 4
      %s795 = int_to_ptr.vmem [resolvable:$true] %s794
      %797 = dma.vmem_to_hbm [thread:$0]  %s795, 128, %s3, [#allocation4]
    $region25: #{tpu_custom_call.1} parent=1 // pred_fallthru
      _
    // Predicated region
    $region26: #{tpu_custom_call.1} parent=1 // pred_check
      _
    $region27: #{tpu_custom_call.1} parent=1 // pred_check_branch
      %799 = sbr.rel (0) target = $region29
    $region28: #{tpu_custom_call.1} parent=1 // pred_region
      %800 = dma.done [#allocation4], 128
    $region29: #{tpu_custom_call.1} parent=1 // pred_fallthru
      _
    %801 = vsyncpa [#allocation3], 1
    %802 = vsyncpa [#allocation6], 1
    %803 = vsyncpa [#allocation4], 1

</llo_original>
